<compile_context>
chip_gen: v5e
topology: v5e:2x2
jax: 0.10.0
libtpu: 0.0.40
codegen_flags: <defaults>
</compile_context>

<pallas_src>
import jax
import jax.numpy as jnp
from jax.experimental import pallas as pl
from jax.experimental.pallas import tpu as pltpu  # noqa: F401  (TPU backend import)

STATE_DIM = 14
STATE_DIM_PADDED = 16          # pad K of layer 1 to a friendlier width
HIDDEN_DIM = 256
ACTION_DIM = 2
LOG_STD_MIN = -20.0
LOG_STD_MAX = 2.0


def actor_kernel(x_ref,
                 w1_ref, b1_ref,
                 w2_ref, b2_ref,
                 w3_ref, b3_ref,
                 wh_ref, bh_ref,
                 out_ref):
    """Whole SAC-actor forward in one invocation (all operands VMEM-resident).

    x_ref: (B, 16) bf16   weights: bf16   biases: f32   out: (B, 2*ACTION_DIM) f32
    """
    x = x_ref[...]  # bf16

    # Layer 1: Linear(16 -> 256) + ReLU  (bf16 MXU inputs, f32 accumulate)
    h = jnp.dot(x, w1_ref[...], preferred_element_type=jnp.float32) + b1_ref[...]
    h = jnp.maximum(h, 0.0)

    # Layer 2: Linear(256 -> 256) + ReLU
    h = jnp.dot(h.astype(jnp.bfloat16), w2_ref[...],
                preferred_element_type=jnp.float32) + b2_ref[...]
    h = jnp.maximum(h, 0.0)

    # Layer 3: Linear(256 -> 256) + ReLU
    h = jnp.dot(h.astype(jnp.bfloat16), w3_ref[...],
                preferred_element_type=jnp.float32) + b3_ref[...]
    h = jnp.maximum(h, 0.0)

    # Fused heads: single matmul producing [mean | log_std]  -> (B, 2*ACTION_DIM)
    heads = jnp.dot(h.astype(jnp.bfloat16), wh_ref[...],
                    preferred_element_type=jnp.float32) + bh_ref[...]

    # Clamp only the log_std columns (col >= ACTION_DIM) with whole-vreg ops.
    col = jax.lax.broadcasted_iota(jnp.int32, heads.shape, dimension=1)
    clipped = jnp.clip(heads, LOG_STD_MIN, LOG_STD_MAX)
    out_ref[...] = jnp.where(col < ACTION_DIM, heads, clipped).astype(out_ref.dtype)


def _full_block_spec(arr):
    """Full-array block; rank bound at definition time (no late-binding bug)."""
    nd = arr.ndim
    return pl.BlockSpec(arr.shape, lambda nd=nd: (0,) * nd)


def actor_forward(x, params):
    """x: (B, STATE_DIM) f32 -> (mean, log_std), each (B, ACTION_DIM) f32."""
    B = x.shape[0]
    # Pad state 14 -> 16 and cast to bf16 once, outside the kernel.
    x_p = jnp.pad(x, ((0, 0), (0, STATE_DIM_PADDED - STATE_DIM))).astype(jnp.bfloat16)

    args = (x_p,
            params["w1"], params["b1"],
            params["w2"], params["b2"],
            params["w3"], params["b3"],
            params["wh"], params["bh"])

    heads = pl.pallas_call(
        actor_kernel,
        out_shape=jax.ShapeDtypeStruct((B, 2 * ACTION_DIM), jnp.float32),
        grid=(),
        in_specs=[_full_block_spec(a) for a in args],
        out_specs=pl.BlockSpec((B, 2 * ACTION_DIM), lambda: (0, 0)),
    )(*args)

    mean = heads[:, :ACTION_DIM]
    log_std = heads[:, ACTION_DIM:]
    return mean, log_std


def init_params(key):
    """nn.Linear-style U(-1/sqrt(fan_in), 1/sqrt(fan_in)) init, repacked for the kernel:
       weights as (in, out) bf16 (w1 zero-padded to 16 rows, heads fused), biases (1, out) f32."""
    def linear(key, fan_in, fan_out):
        kw, kb = jax.random.split(key)
        bound = 1.0 / jnp.sqrt(fan_in)
        w = jax.random.uniform(kw, (fan_in, fan_out), jnp.float32, -bound, bound)
        b = jax.random.uniform(kb, (1, fan_out), jnp.float32, -bound, bound)
        return w, b

    k1, k2, k3, km, ks = jax.random.split(key, 5)
    w1, b1 = linear(k1, STATE_DIM, HIDDEN_DIM)
    w2, b2 = linear(k2, HIDDEN_DIM, HIDDEN_DIM)
    w3, b3 = linear(k3, HIDDEN_DIM, HIDDEN_DIM)
    wm, bm = linear(km, HIDDEN_DIM, ACTION_DIM)
    ws, bs = linear(ks, HIDDEN_DIM, ACTION_DIM)

    # Pad w1 rows 14 -> 16 (matches zero-padded state), fuse mean/log_std heads.
    w1_p = jnp.pad(w1, ((0, STATE_DIM_PADDED - STATE_DIM), (0, 0)))
    wh = jnp.concatenate([wm, ws], axis=1)        # (HIDDEN_DIM, 2*ACTION_DIM)
    bh = jnp.concatenate([bm, bs], axis=1)        # (1, 2*ACTION_DIM)

    return dict(
        w1=w1_p.astype(jnp.bfloat16), b1=b1,
        w2=w2.astype(jnp.bfloat16),  b2=b2,
        w3=w3.astype(jnp.bfloat16),  b3=b3,
        wh=wh.astype(jnp.bfloat16),  bh=bh,
    )


def actor_forward_ref(x, p):
    """Pure-JAX reference mirroring the kernel's bf16-input / f32-accumulate math."""
    x_p = jnp.pad(x, ((0, 0), (0, STATE_DIM_PADDED - STATE_DIM))).astype(jnp.bfloat16)
    h = jnp.maximum(jnp.dot(x_p, p["w1"], preferred_element_type=jnp.float32) + p["b1"], 0.0)
    h = jnp.maximum(jnp.dot(h.astype(jnp.bfloat16), p["w2"],
                            preferred_element_type=jnp.float32) + p["b2"], 0.0)
    h = jnp.maximum(jnp.dot(h.astype(jnp.bfloat16), p["w3"],
                            preferred_element_type=jnp.float32) + p["b3"], 0.0)
    heads = jnp.dot(h.astype(jnp.bfloat16), p["wh"],
                    preferred_element_type=jnp.float32) + p["bh"]
    mean = heads[:, :ACTION_DIM]
    log_std = jnp.clip(heads[:, ACTION_DIM:], LOG_STD_MIN, LOG_STD_MAX)
    return mean, log_std


if __name__ == "__main__":
    key = jax.random.PRNGKey(0)
    kp, kx = jax.random.split(key)
    params = init_params(kp)

    B = 8  # small batch
    x = jax.random.normal(kx, (B, STATE_DIM), jnp.float32)

    mean, log_std = actor_forward(x, params)
    jax.block_until_ready((mean, log_std))

    mean_ref, log_std_ref = actor_forward_ref(x, params)
    assert mean.shape == (B, ACTION_DIM) and log_std.shape == (B, ACTION_DIM)
    assert jnp.allclose(mean, mean_ref, atol=1e-3, rtol=1e-3)
    assert jnp.allclose(log_std, log_std_ref, atol=1e-3, rtol=1e-3)
    assert bool(jnp.all(log_std <= LOG_STD_MAX)) and bool(jnp.all(log_std >= LOG_STD_MIN))

    print("KERNEL_OK")
</pallas_src>

<mosaic_0001>
module attributes {stable_mosaic.version = 11 : i64} {
  func.func @actor_kernel(%arg0: memref<8x16xbf16, #tpu.memory_space<vmem>>, %arg1: memref<16x256xbf16, #tpu.memory_space<vmem>>, %arg2: memref<1x256xf32, #tpu.memory_space<vmem>>, %arg3: memref<256x256xbf16, #tpu.memory_space<vmem>>, %arg4: memref<1x256xf32, #tpu.memory_space<vmem>>, %arg5: memref<256x256xbf16, #tpu.memory_space<vmem>>, %arg6: memref<1x256xf32, #tpu.memory_space<vmem>>, %arg7: memref<256x4xbf16, #tpu.memory_space<vmem>>, %arg8: memref<1x4xf32, #tpu.memory_space<vmem>>, %arg9: memref<8x4xf32, #tpu.memory_space<vmem>>) attributes {dimension_semantics = [], scalar_prefetch = 0 : i64, scratch_operands = 0 : i64, tpu.core_type = #tpu.core_type<tc>} {
    %c0 = arith.constant 0 : index
    %c0_0 = arith.constant 0 : index
    %0 = vector.load %arg0[%c0, %c0_0] : memref<8x16xbf16, #tpu.memory_space<vmem>>, vector<8x16xbf16>
    %c0_1 = arith.constant 0 : index
    %c0_2 = arith.constant 0 : index
    %1 = vector.load %arg1[%c0_1, %c0_2] : memref<16x256xbf16, #tpu.memory_space<vmem>>, vector<16x256xbf16>
    %cst = arith.constant dense<0.000000e+00> : vector<8x256xf32>
    %2 = tpu.matmul %0, %1, %cst {dimension_numbers = #tpu.dot_dimension_numbers<[1], [0], [0], [1], [0, 0, 1, 1], [], []>} : vector<8x16xbf16>, vector<16x256xbf16>, vector<8x256xf32> -> vector<8x256xf32>
    %c0_3 = arith.constant 0 : index
    %c0_4 = arith.constant 0 : index
    %3 = vector.load %arg2[%c0_3, %c0_4] : memref<1x256xf32, #tpu.memory_space<vmem>>, vector<1x256xf32>
    %4 = vector.broadcast %3 : vector<1x256xf32> to vector<8x256xf32>
    %5 = arith.addf %2, %4 : vector<8x256xf32>
    %cst_5 = arith.constant 0.000000e+00 : f32
    %6 = vector.broadcast %cst_5 : f32 to vector<8x256xf32>
    %7 = arith.maximumf %5, %6 : vector<8x256xf32>
    %8 = arith.truncf %7 : vector<8x256xf32> to vector<8x256xbf16>
    %c0_6 = arith.constant 0 : index
    %c0_7 = arith.constant 0 : index
    %9 = vector.load %arg3[%c0_6, %c0_7] : memref<256x256xbf16, #tpu.memory_space<vmem>>, vector<256x256xbf16>
    %cst_8 = arith.constant dense<0.000000e+00> : vector<8x256xf32>
    %10 = tpu.matmul %8, %9, %cst_8 {dimension_numbers = #tpu.dot_dimension_numbers<[1], [0], [0], [1], [0, 0, 1, 1], [], []>} : vector<8x256xbf16>, vector<256x256xbf16>, vector<8x256xf32> -> vector<8x256xf32>
    %c0_9 = arith.constant 0 : index
    %c0_10 = arith.constant 0 : index
    %11 = vector.load %arg4[%c0_9, %c0_10] : memref<1x256xf32, #tpu.memory_space<vmem>>, vector<1x256xf32>
    %12 = vector.broadcast %11 : vector<1x256xf32> to vector<8x256xf32>
    %13 = arith.addf %10, %12 : vector<8x256xf32>
    %cst_11 = arith.constant 0.000000e+00 : f32
    %14 = vector.broadcast %cst_11 : f32 to vector<8x256xf32>
    %15 = arith.maximumf %13, %14 : vector<8x256xf32>
    %16 = arith.truncf %15 : vector<8x256xf32> to vector<8x256xbf16>
    %c0_12 = arith.constant 0 : index
    %c0_13 = arith.constant 0 : index
    %17 = vector.load %arg5[%c0_12, %c0_13] : memref<256x256xbf16, #tpu.memory_space<vmem>>, vector<256x256xbf16>
    %cst_14 = arith.constant dense<0.000000e+00> : vector<8x256xf32>
    %18 = tpu.matmul %16, %17, %cst_14 {dimension_numbers = #tpu.dot_dimension_numbers<[1], [0], [0], [1], [0, 0, 1, 1], [], []>} : vector<8x256xbf16>, vector<256x256xbf16>, vector<8x256xf32> -> vector<8x256xf32>
    %c0_15 = arith.constant 0 : index
    %c0_16 = arith.constant 0 : index
    %19 = vector.load %arg6[%c0_15, %c0_16] : memref<1x256xf32, #tpu.memory_space<vmem>>, vector<1x256xf32>
    %20 = vector.broadcast %19 : vector<1x256xf32> to vector<8x256xf32>
    %21 = arith.addf %18, %20 : vector<8x256xf32>
    %cst_17 = arith.constant 0.000000e+00 : f32
    %22 = vector.broadcast %cst_17 : f32 to vector<8x256xf32>
    %23 = arith.maximumf %21, %22 : vector<8x256xf32>
    %24 = arith.truncf %23 : vector<8x256xf32> to vector<8x256xbf16>
    %c0_18 = arith.constant 0 : index
    %c0_19 = arith.constant 0 : index
    %25 = vector.load %arg7[%c0_18, %c0_19] : memref<256x4xbf16, #tpu.memory_space<vmem>>, vector<256x4xbf16>
    %cst_20 = arith.constant dense<0.000000e+00> : vector<8x4xf32>
    %26 = tpu.matmul %24, %25, %cst_20 {dimension_numbers = #tpu.dot_dimension_numbers<[1], [0], [0], [1], [0, 0, 1, 1], [], []>} : vector<8x256xbf16>, vector<256x4xbf16>, vector<8x4xf32> -> vector<8x4xf32>
    %c0_21 = arith.constant 0 : index
    %c0_22 = arith.constant 0 : index
    %27 = vector.load %arg8[%c0_21, %c0_22] : memref<1x4xf32, #tpu.memory_space<vmem>>, vector<1x4xf32>
    %28 = vector.broadcast %27 : vector<1x4xf32> to vector<8x4xf32>
    %29 = arith.addf %26, %28 : vector<8x4xf32>
    %30 = tpu.iota {dimensions = array<i32: 1>} : vector<8x4xi32>
    %cst_23 = arith.constant -2.000000e+01 : f32
    %cst_24 = arith.constant 2.000000e+00 : f32
    %31 = vector.broadcast %cst_23 : f32 to vector<8x4xf32>
    %32 = arith.maximumf %31, %29 : vector<8x4xf32>
    %33 = vector.broadcast %cst_24 : f32 to vector<8x4xf32>
    %34 = arith.minimumf %33, %32 : vector<8x4xf32>
    %c2_i32 = arith.constant 2 : i32
    %35 = vector.broadcast %c2_i32 : i32 to vector<8x4xi32>
    %36 = arith.cmpi slt, %30, %35 : vector<8x4xi32>
    %37 = arith.select %36, %29, %34 : vector<8x4xi1>, vector<8x4xf32>
    %c0_25 = arith.constant 0 : index
    %c0_26 = arith.constant 0 : index
    %38 = vector.load %arg9[%c0_25, %c0_26] : memref<8x4xf32, #tpu.memory_space<vmem>>, vector<8x4xf32>
    tpu.vector_store %arg9[%c0_25, %c0_26], %37 {strides = array<i32>} : memref<8x4xf32, #tpu.memory_space<vmem>>, vector<8x4xf32>,
    return
  }
}

</mosaic_0001>

<llo_original>
// kernel: tpu_custom_call.1
$region0: #{tpu_custom_call.1}
  #allocation0 [shape = 'u32[]', space=smem, size = 0x4, offset = 0x4, fixed_abs, tag = 'smem constant byte address 0x4 - core index']
  #allocation1 [shape = 'u32[72,128]{1,0:T(1,128)}', space=vmem, size = 0x9000, scoped, tag = 'internal scratch']
  %s0 = inlined_call_operand.vmem [shape: bf16[8,16], index: 0, kind: input, shape index: {}]
  %s1 = inlined_call_operand.vmem [shape: bf16[16,256], index: 1, kind: input, shape index: {}]
  %s2 = inlined_call_operand.vmem [shape: f32[1,256], index: 2, kind: input, shape index: {}]
  %s3 = inlined_call_operand.hbm [shape: bf16[256,256], index: 3, kind: input, shape index: {}]
  %s4 = inlined_call_operand.vmem [shape: f32[1,256], index: 4, kind: input, shape index: {}]
  %s5 = inlined_call_operand.hbm [shape: bf16[256,256], index: 5, kind: input, shape index: {}]
  %s6 = inlined_call_operand.vmem [shape: f32[1,256], index: 6, kind: input, shape index: {}]
  %s7 = inlined_call_operand.vmem [shape: bf16[256,4], index: 7, kind: input, shape index: {}]
  %s8 = inlined_call_operand.vmem [shape: f32[1,4], index: 8, kind: input, shape index: {}]
  %s9 = inlined_call_operand.vmem [shape: f32[8,4], index: 9, kind: output, shape index: {}]
  %s10 = sld [smem:[#allocation0]]
  $region54: #{tpu_custom_call.1} parent=0
    _
  %s12 = ssub.s32 1, %s10
  %s13 = scalar_select 0, %s12, %s10
  $region1: #{tpu_custom_call.1} parent=0
    #allocation2 [shape = 'u8[131072]{0}', space=vmem, size = 0x20000, scoped, tag = 'input window, operand 3, single buffered']
    #allocation3 [shape = 's32[1]{0}', space=sflag, size = 0x4, scoped, tag = 'scoped memory for tpu_custom_call.1']
    #allocation4 [shape = 'u8[131072]{0}', space=vmem, size = 0x20000, scoped, tag = 'input window, operand 5, single buffered']
    #allocation5 [shape = 's32[1]{0}', space=sflag, size = 0x4, scoped, tag = 'scoped memory for tpu_custom_call.1']
    %14 = vsyncpa [#allocation3], 0
    %15 = vsyncpa [#allocation5], 0
    // Predicated region
    $region2: #{tpu_custom_call.1} parent=1 // pred_check
      _
    $region3: #{tpu_custom_call.1} parent=1 // pred_check_branch
      %17 = sbr.rel (0) target = $region5
    $region4: #{tpu_custom_call.1} parent=1 // pred_region
      _
    $region5: #{tpu_custom_call.1} parent=1 // pred_fallthru
      _
    // Predicated region
    $region6: #{tpu_custom_call.1} parent=1 // pred_check
      _
    $region7: #{tpu_custom_call.1} parent=1 // pred_check_branch
      %19 = sbr.rel (0) target = $region9
    $region8: #{tpu_custom_call.1} parent=1 // pred_region
      _
    $region9: #{tpu_custom_call.1} parent=1 // pred_fallthru
      _
    // Predicated region
    $region10: #{tpu_custom_call.1} parent=1 // pred_check
      _
    $region11: #{tpu_custom_call.1} parent=1 // pred_check_branch
      %21 = sbr.rel (0) target = $region13
    $region12: #{tpu_custom_call.1} parent=1 // pred_region
      _
    $region13: #{tpu_custom_call.1} parent=1 // pred_fallthru
      _
    // Predicated region
    $region14: #{tpu_custom_call.1} parent=1 // pred_check
      _
    $region15: #{tpu_custom_call.1} parent=1 // pred_check_branch
      %23 = sbr.rel (0) target = $region17
    $region16: #{tpu_custom_call.1} parent=1 // pred_region
      %25 = vsyncadd [#allocation3], 0
      %s26 = sshll.u32 %s3, 4
      %s27 = int_to_ptr.hbm [resolvable:$true] %s26
      %s28 = sshll.u32 [#allocation2], 4
      %s29 = int_to_ptr.vmem [resolvable:$true] %s28
      %34 = dma.hbm_to_vmem [thread:$0]  %s27, 4096, %s29, [#allocation3], 128, 128, 8
    $region17: #{tpu_custom_call.1} parent=1 // pred_fallthru
      _
    // Predicated region
    $region18: #{tpu_custom_call.1} parent=1 // pred_check
      _
    $region19: #{tpu_custom_call.1} parent=1 // pred_check_branch
      %36 = sbr.rel (0) target = $region21
    $region20: #{tpu_custom_call.1} parent=1 // pred_region
      _
    $region21: #{tpu_custom_call.1} parent=1 // pred_fallthru
      _
    // Predicated region
    $region22: #{tpu_custom_call.1} parent=1 // pred_check
      _
    $region23: #{tpu_custom_call.1} parent=1 // pred_check_branch
      %38 = sbr.rel (0) target = $region25
    $region24: #{tpu_custom_call.1} parent=1 // pred_region
      %40 = vsyncadd [#allocation5], 0
      %s41 = sshll.u32 %s5, 4
      %s42 = int_to_ptr.hbm [resolvable:$true] %s41
      %s43 = sshll.u32 [#allocation4], 4
      %s44 = int_to_ptr.vmem [resolvable:$true] %s43
      %49 = dma.hbm_to_vmem [thread:$0]  %s42, 4096, %s44, [#allocation5], 128, 128, 8
    $region25: #{tpu_custom_call.1} parent=1 // pred_fallthru
      _
    // Predicated region
    $region26: #{tpu_custom_call.1} parent=1 // pred_check
      _
    $region27: #{tpu_custom_call.1} parent=1 // pred_check_branch
      %51 = sbr.rel (0) target = $region29
    $region28: #{tpu_custom_call.1} parent=1 // pred_region
      _
    $region29: #{tpu_custom_call.1} parent=1 // pred_fallthru
      _
    // Predicated region
    $region30: #{tpu_custom_call.1} parent=1 // pred_check
      _
    $region31: #{tpu_custom_call.1} parent=1 // pred_check_branch
      %53 = sbr.rel (0) target = $region33
    $region32: #{tpu_custom_call.1} parent=1 // pred_region
      _
    $region33: #{tpu_custom_call.1} parent=1 // pred_fallthru
      _
    // Predicated region
    $region34: #{tpu_custom_call.1} parent=1 // pred_check
      _
    $region35: #{tpu_custom_call.1} parent=1 // pred_check_branch
      %55 = sbr.rel (0) target = $region37
    $region36: #{tpu_custom_call.1} parent=1 // pred_region
      _
    $region37: #{tpu_custom_call.1} parent=1 // pred_fallthru
      _
    // Predicated region
    $region38: #{tpu_custom_call.1} parent=1 // pred_check
      _
    $region39: #{tpu_custom_call.1} parent=1 // pred_check_branch
      %57 = sbr.rel (0) target = $region41
    $region40: #{tpu_custom_call.1} parent=1 // pred_region
      %59 = dma.done [#allocation3], 4096
    $region41: #{tpu_custom_call.1} parent=1 // pred_fallthru
      _
    // Predicated region
    $region42: #{tpu_custom_call.1} parent=1 // pred_check
      _
    $region43: #{tpu_custom_call.1} parent=1 // pred_check_branch
      %61 = sbr.rel (0) target = $region45
    $region44: #{tpu_custom_call.1} parent=1 // pred_region
      %63 = dma.done [#allocation5], 4096
    $region45: #{tpu_custom_call.1} parent=1 // pred_fallthru
      _
    %v65 = vld [vmem:[%s0] sm:$0xf]
    %v66 = vld [vmem:[%s1] sm:$0xff]
    %v67 = vld [vmem:[%s1 + $0x8] sm:$0xff]
    %v68 = vld [vmem:[%s2] sm:$0x3]
    %v70 = vperm.slane %v68, 0
    %v71 = vperm.slane %v68, 1
    %v76 = vunpack.c.l.b16 %v66
    %v77 = vunpack.c.h.b16 %v66
    %v78 = vunpack.c.l.b16 %v67
    %v79 = vunpack.c.h.b16 %v67
    %v80 = vpack.c.b16 %v78, %v76
    %v81 = vpack.c.b16 %v79, %v77
    %vm84 = vcmask 130048
    %v86 = vsel %vm84, %v65, 0
    %88 = vmatpush.bf16.msra.mxu0 0
    %89 = vmatpush.bf16.msra.mxu0 0
    %90 = vmatpush.bf16.msra.mxu0 0
    %91 = vmatpush.bf16.msra.mxu0 0
    %92 = vmatpush.bf16.msra.mxu0 0
    %93 = vmatpush.bf16.msra.mxu0 0
    %94 = vmatpush.bf16.msra.mxu0 0
    %95 = vmatpush.bf16.msra.mxu0 %v80
    %96 = vmatmul.bf16.gmra.mxu0 %v86
    %v97 = vpop.f32.mrf.mxu0
    %v98 = vadd.f32 %v70, %v97
    %v99 = vpop.f32.mrf.mxu0
    %100 = vdwg.mxu0
    %101 = vmatpush.bf16.msra.mxu0 0
    %102 = vmatpush.bf16.msra.mxu0 0
    %103 = vmatpush.bf16.msra.mxu0 0
    %104 = vmatpush.bf16.msra.mxu0 0
    %105 = vmatpush.bf16.msra.mxu0 0
    %106 = vmatpush.bf16.msra.mxu0 0
    %107 = vmatpush.bf16.msra.mxu0 0
    %108 = vmatpush.bf16.msra.mxu0 %v81
    %109 = vmatmul.bf16.gmra.mxu0 %v86
    %v110 = vpop.f32.mrf.mxu0
    %v111 = vadd.f32 %v71, %v110
    %v112 = vpop.f32.mrf.mxu0
    %113 = vdwg.mxu0
    %v114 = vmax.f32 %v98, 0.0
    %v115 = vmax.f32 %v111, 0.0
    %v116 = vpack.c.bf16 %v114, %v114
    %v117 = vpack.c.bf16 %v115, %v115
    %v118 = vld [vmem:[#allocation2] sm:$0xff]
    %v119 = vld [vmem:[#allocation2 + $0x8] sm:$0xff]
    %v120 = vld [vmem:[#allocation2 + $0x10] sm:$0xff]
    %v121 = vld [vmem:[#allocation2 + $0x18] sm:$0xff]
    %v122 = vld [vmem:[#allocation2 + $0x20] sm:$0xff]
    %v123 = vld [vmem:[#allocation2 + $0x28] sm:$0xff]
    %v124 = vld [vmem:[#allocation2 + $0x30] sm:$0xff]
    %v125 = vld [vmem:[#allocation2 + $0x38] sm:$0xff]
    %v126 = vld [vmem:[#allocation2 + $0x40] sm:$0xff]
    %v127 = vld [vmem:[#allocation2 + $0x48] sm:$0xff]
    %v128 = vld [vmem:[#allocation2 + $0x50] sm:$0xff]
    %v129 = vld [vmem:[#allocation2 + $0x58] sm:$0xff]
    %v130 = vld [vmem:[#allocation2 + $0x60] sm:$0xff]
    %v131 = vld [vmem:[#allocation2 + $0x68] sm:$0xff]
    %v132 = vld [vmem:[#allocation2 + $0x70] sm:$0xff]
    %v133 = vld [vmem:[#allocation2 + $0x78] sm:$0xff]
    %v134 = vld [vmem:[#allocation2 + $0x80] sm:$0xff]
    %v135 = vld [vmem:[#allocation2 + $0x88] sm:$0xff]
    %v136 = vld [vmem:[#allocation2 + $0x90] sm:$0xff]
    %v137 = vld [vmem:[#allocation2 + $0x98] sm:$0xff]
    %v138 = vld [vmem:[#allocation2 + $0xa0] sm:$0xff]
    %v139 = vld [vmem:[#allocation2 + $0xa8] sm:$0xff]
    %v140 = vld [vmem:[#allocation2 + $0xb0] sm:$0xff]
    %v141 = vld [vmem:[#allocation2 + $0xb8] sm:$0xff]
    %v142 = vld [vmem:[#allocation2 + $0xc0] sm:$0xff]
    %v143 = vld [vmem:[#allocation2 + $0xc8] sm:$0xff]
    %v144 = vld [vmem:[#allocation2 + $0xd0] sm:$0xff]
    %v145 = vld [vmem:[#allocation2 + $0xd8] sm:$0xff]
    %v146 = vld [vmem:[#allocation2 + $0xe0] sm:$0xff]
    %v147 = vld [vmem:[#allocation2 + $0xe8] sm:$0xff]
    %v148 = vld [vmem:[#allocation2 + $0xf0] sm:$0xff]
    %v149 = vld [vmem:[#allocation2 + $0xf8] sm:$0xff]
    %v150 = vld [vmem:[%s4] sm:$0x3]
    %v152 = vperm.slane %v150, 0
    %v153 = vperm.slane %v150, 1
    %v188 = vunpack.c.l.b16 %v118
    %v189 = vunpack.c.h.b16 %v118
    %v190 = vunpack.c.l.b16 %v119
    %v191 = vunpack.c.h.b16 %v119
    %v192 = vunpack.c.l.b16 %v120
    %v193 = vunpack.c.h.b16 %v120
    %v194 = vunpack.c.l.b16 %v121
    %v195 = vunpack.c.h.b16 %v121
    %v196 = vunpack.c.l.b16 %v122
    %v197 = vunpack.c.h.b16 %v122
    %v198 = vunpack.c.l.b16 %v123
    %v199 = vunpack.c.h.b16 %v123
    %v200 = vunpack.c.l.b16 %v124
    %v201 = vunpack.c.h.b16 %v124
    %v202 = vunpack.c.l.b16 %v125
    %v203 = vunpack.c.h.b16 %v125
    %v204 = vunpack.c.l.b16 %v126
    %v205 = vunpack.c.h.b16 %v126
    %v206 = vunpack.c.l.b16 %v127
    %v207 = vunpack.c.h.b16 %v127
    %v208 = vunpack.c.l.b16 %v128
    %v209 = vunpack.c.h.b16 %v128
    %v210 = vunpack.c.l.b16 %v129
    %v211 = vunpack.c.h.b16 %v129
    %v212 = vunpack.c.l.b16 %v130
    %v213 = vunpack.c.h.b16 %v130
    %v214 = vunpack.c.l.b16 %v131
    %v215 = vunpack.c.h.b16 %v131
    %v216 = vunpack.c.l.b16 %v132
    %v217 = vunpack.c.h.b16 %v132
    %v218 = vunpack.c.l.b16 %v133
    %v219 = vunpack.c.h.b16 %v133
    %v220 = vunpack.c.l.b16 %v134
    %v221 = vunpack.c.h.b16 %v134
    %v222 = vunpack.c.l.b16 %v135
    %v223 = vunpack.c.h.b16 %v135
    %v224 = vunpack.c.l.b16 %v136
    %v225 = vunpack.c.h.b16 %v136
    %v226 = vunpack.c.l.b16 %v137
    %v227 = vunpack.c.h.b16 %v137
    %v228 = vunpack.c.l.b16 %v138
    %v229 = vunpack.c.h.b16 %v138
    %v230 = vunpack.c.l.b16 %v139
    %v231 = vunpack.c.h.b16 %v139
    %v232 = vunpack.c.l.b16 %v140
    %v233 = vunpack.c.h.b16 %v140
    %v234 = vunpack.c.l.b16 %v141
    %v235 = vunpack.c.h.b16 %v141
    %v236 = vunpack.c.l.b16 %v142
    %v237 = vunpack.c.h.b16 %v142
    %v238 = vunpack.c.l.b16 %v143
    %v239 = vunpack.c.h.b16 %v143
    %v240 = vunpack.c.l.b16 %v144
    %v241 = vunpack.c.h.b16 %v144
    %v242 = vunpack.c.l.b16 %v145
    %v243 = vunpack.c.h.b16 %v145
    %v244 = vunpack.c.l.b16 %v146
    %v245 = vunpack.c.h.b16 %v146
    %v246 = vunpack.c.l.b16 %v147
    %v247 = vunpack.c.h.b16 %v147
    %v248 = vunpack.c.l.b16 %v148
    %v249 = vunpack.c.h.b16 %v148
    %v250 = vunpack.c.l.b16 %v149
    %v251 = vunpack.c.h.b16 %v149
    %v252 = vpack.c.b16 %v190, %v188
    %v253 = vpack.c.b16 %v191, %v189
    %v254 = vpack.c.b16 %v194, %v192
    %v255 = vpack.c.b16 %v195, %v193
    %v256 = vpack.c.b16 %v198, %v196
    %v257 = vpack.c.b16 %v199, %v197
    %v258 = vpack.c.b16 %v202, %v200
    %v259 = vpack.c.b16 %v203, %v201
    %v260 = vpack.c.b16 %v206, %v204
    %v261 = vpack.c.b16 %v207, %v205
    %v262 = vpack.c.b16 %v210, %v208
    %v263 = vpack.c.b16 %v211, %v209
    %v264 = vpack.c.b16 %v214, %v212
    %v265 = vpack.c.b16 %v215, %v213
    %v266 = vpack.c.b16 %v218, %v216
    %v267 = vpack.c.b16 %v219, %v217
    %v268 = vpack.c.b16 %v222, %v220
    %v269 = vpack.c.b16 %v223, %v221
    %v270 = vpack.c.b16 %v226, %v224
    %v271 = vpack.c.b16 %v227, %v225
    %v272 = vpack.c.b16 %v230, %v228
    %v273 = vpack.c.b16 %v231, %v229
    %v274 = vpack.c.b16 %v234, %v232
    %v275 = vpack.c.b16 %v235, %v233
    %v276 = vpack.c.b16 %v238, %v236
    %v277 = vpack.c.b16 %v239, %v237
    %v278 = vpack.c.b16 %v242, %v240
    %v279 = vpack.c.b16 %v243, %v241
    %v280 = vpack.c.b16 %v246, %v244
    %v281 = vpack.c.b16 %v247, %v245
    %v282 = vpack.c.b16 %v250, %v248
    %v283 = vpack.c.b16 %v251, %v249
    %316 = vmatpush.bf16.msra.mxu0 %v266
    %317 = vmatpush.bf16.msra.mxu0 %v264
    %318 = vmatpush.bf16.msra.mxu0 %v262
    %319 = vmatpush.bf16.msra.mxu0 %v260
    %320 = vmatpush.bf16.msra.mxu0 %v258
    %321 = vmatpush.bf16.msra.mxu0 %v256
    %322 = vmatpush.bf16.msra.mxu0 %v254
    %323 = vmatpush.bf16.msra.mxu0 %v252
    %324 = vmatmul.bf16.gmra.mxu0 %v116
    %v325 = vpop.f32.mrf.mxu0
    %v326 = vadd.f32 %v152, %v325
    %v327 = vpop.f32.mrf.mxu0
    %328 = vdwg.mxu0
    %329 = vmatpush.bf16.msra.mxu0 %v282
    %330 = vmatpush.bf16.msra.mxu0 %v280
    %331 = vmatpush.bf16.msra.mxu0 %v278
    %332 = vmatpush.bf16.msra.mxu0 %v276
    %333 = vmatpush.bf16.msra.mxu0 %v274
    %334 = vmatpush.bf16.msra.mxu0 %v272
    %335 = vmatpush.bf16.msra.mxu0 %v270
    %336 = vmatpush.bf16.msra.mxu0 %v268
    %337 = vmatmul.bf16.gmra.mxu0 %v117
    %v338 = vpop.f32.mrf.mxu0
    %v339 = vadd.f32 %v326, %v338
    %v340 = vpop.f32.mrf.mxu0
    %341 = vdwg.mxu0
    %342 = vmatpush.bf16.msra.mxu0 %v267
    %343 = vmatpush.bf16.msra.mxu0 %v265
    %344 = vmatpush.bf16.msra.mxu0 %v263
    %345 = vmatpush.bf16.msra.mxu0 %v261
    %346 = vmatpush.bf16.msra.mxu0 %v259
    %347 = vmatpush.bf16.msra.mxu0 %v257
    %348 = vmatpush.bf16.msra.mxu0 %v255
    %349 = vmatpush.bf16.msra.mxu0 %v253
    %350 = vmatmul.bf16.gmra.mxu0 %v116
    %v351 = vpop.f32.mrf.mxu0
    %v352 = vadd.f32 %v153, %v351
    %v353 = vpop.f32.mrf.mxu0
    %354 = vdwg.mxu0
    %355 = vmatpush.bf16.msra.mxu0 %v283
    %356 = vmatpush.bf16.msra.mxu0 %v281
    %357 = vmatpush.bf16.msra.mxu0 %v279
    %358 = vmatpush.bf16.msra.mxu0 %v277
    %359 = vmatpush.bf16.msra.mxu0 %v275
    %360 = vmatpush.bf16.msra.mxu0 %v273
    %361 = vmatpush.bf16.msra.mxu0 %v271
    %362 = vmatpush.bf16.msra.mxu0 %v269
    %363 = vmatmul.bf16.gmra.mxu0 %v117
    %v364 = vpop.f32.mrf.mxu0
    %v365 = vadd.f32 %v352, %v364
    %v366 = vpop.f32.mrf.mxu0
    %367 = vdwg.mxu0
    %v368 = vmax.f32 %v339, 0.0
    %v369 = vmax.f32 %v365, 0.0
    %v370 = vpack.c.bf16 %v368, %v368
    %v371 = vpack.c.bf16 %v369, %v369
    %v372 = vld [vmem:[#allocation4] sm:$0xff]
    %v373 = vld [vmem:[#allocation4 + $0x8] sm:$0xff]
    %v374 = vld [vmem:[#allocation4 + $0x10] sm:$0xff]
    %v375 = vld [vmem:[#allocation4 + $0x18] sm:$0xff]
    %v376 = vld [vmem:[#allocation4 + $0x20] sm:$0xff]
    %v377 = vld [vmem:[#allocation4 + $0x28] sm:$0xff]
    %v378 = vld [vmem:[#allocation4 + $0x30] sm:$0xff]
    %v379 = vld [vmem:[#allocation4 + $0x38] sm:$0xff]
    %v380 = vld [vmem:[#allocation4 + $0x40] sm:$0xff]
    %v381 = vld [vmem:[#allocation4 + $0x48] sm:$0xff]
    %v382 = vld [vmem:[#allocation4 + $0x50] sm:$0xff]
    %v383 = vld [vmem:[#allocation4 + $0x58] sm:$0xff]
    %v384 = vld [vmem:[#allocation4 + $0x60] sm:$0xff]
    %v385 = vld [vmem:[#allocation4 + $0x68] sm:$0xff]
    %v386 = vld [vmem:[#allocation4 + $0x70] sm:$0xff]
    %v387 = vld [vmem:[#allocation4 + $0x78] sm:$0xff]
    %v388 = vld [vmem:[#allocation4 + $0x80] sm:$0xff]
    %v389 = vld [vmem:[#allocation4 + $0x88] sm:$0xff]
    %v390 = vld [vmem:[#allocation4 + $0x90] sm:$0xff]
    %v391 = vld [vmem:[#allocation4 + $0x98] sm:$0xff]
    %v392 = vld [vmem:[#allocation4 + $0xa0] sm:$0xff]
    %v393 = vld [vmem:[#allocation4 + $0xa8] sm:$0xff]
    %v394 = vld [vmem:[#allocation4 + $0xb0] sm:$0xff]
    %v395 = vld [vmem:[#allocation4 + $0xb8] sm:$0xff]
    %v396 = vld [vmem:[#allocation4 + $0xc0] sm:$0xff]
    %v397 = vld [vmem:[#allocation4 + $0xc8] sm:$0xff]
    %v398 = vld [vmem:[#allocation4 + $0xd0] sm:$0xff]
    %v399 = vld [vmem:[#allocation4 + $0xd8] sm:$0xff]
    %v400 = vld [vmem:[#allocation4 + $0xe0] sm:$0xff]
    %v401 = vld [vmem:[#allocation4 + $0xe8] sm:$0xff]
    %v402 = vld [vmem:[#allocation4 + $0xf0] sm:$0xff]
    %v403 = vld [vmem:[#allocation4 + $0xf8] sm:$0xff]
    %v404 = vld [vmem:[%s6] sm:$0x3]
    %v406 = vperm.slane %v404, 0
    %v407 = vperm.slane %v404, 1
    %v442 = vunpack.c.l.b16 %v372
    %v443 = vunpack.c.h.b16 %v372
    %v444 = vunpack.c.l.b16 %v373
    %v445 = vunpack.c.h.b16 %v373
    %v446 = vunpack.c.l.b16 %v374
    %v447 = vunpack.c.h.b16 %v374
    %v448 = vunpack.c.l.b16 %v375
    %v449 = vunpack.c.h.b16 %v375
    %v450 = vunpack.c.l.b16 %v376
    %v451 = vunpack.c.h.b16 %v376
    %v452 = vunpack.c.l.b16 %v377
    %v453 = vunpack.c.h.b16 %v377
    %v454 = vunpack.c.l.b16 %v378
    %v455 = vunpack.c.h.b16 %v378
    %v456 = vunpack.c.l.b16 %v379
    %v457 = vunpack.c.h.b16 %v379
    %v458 = vunpack.c.l.b16 %v380
    %v459 = vunpack.c.h.b16 %v380
    %v460 = vunpack.c.l.b16 %v381
    %v461 = vunpack.c.h.b16 %v381
    %v462 = vunpack.c.l.b16 %v382
    %v463 = vunpack.c.h.b16 %v382
    %v464 = vunpack.c.l.b16 %v383
    %v465 = vunpack.c.h.b16 %v383
    %v466 = vunpack.c.l.b16 %v384
    %v467 = vunpack.c.h.b16 %v384
    %v468 = vunpack.c.l.b16 %v385
    %v469 = vunpack.c.h.b16 %v385
    %v470 = vunpack.c.l.b16 %v386
    %v471 = vunpack.c.h.b16 %v386
    %v472 = vunpack.c.l.b16 %v387
    %v473 = vunpack.c.h.b16 %v387
    %v474 = vunpack.c.l.b16 %v388
    %v475 = vunpack.c.h.b16 %v388
    %v476 = vunpack.c.l.b16 %v389
    %v477 = vunpack.c.h.b16 %v389
    %v478 = vunpack.c.l.b16 %v390
    %v479 = vunpack.c.h.b16 %v390
    %v480 = vunpack.c.l.b16 %v391
    %v481 = vunpack.c.h.b16 %v391
    %v482 = vunpack.c.l.b16 %v392
    %v483 = vunpack.c.h.b16 %v392
    %v484 = vunpack.c.l.b16 %v393
    %v485 = vunpack.c.h.b16 %v393
    %v486 = vunpack.c.l.b16 %v394
    %v487 = vunpack.c.h.b16 %v394
    %v488 = vunpack.c.l.b16 %v395
    %v489 = vunpack.c.h.b16 %v395
    %v490 = vunpack.c.l.b16 %v396
    %v491 = vunpack.c.h.b16 %v396
    %v492 = vunpack.c.l.b16 %v397
    %v493 = vunpack.c.h.b16 %v397
    %v494 = vunpack.c.l.b16 %v398
    %v495 = vunpack.c.h.b16 %v398
    %v496 = vunpack.c.l.b16 %v399
    %v497 = vunpack.c.h.b16 %v399
    %v498 = vunpack.c.l.b16 %v400
    %v499 = vunpack.c.h.b16 %v400
    %v500 = vunpack.c.l.b16 %v401
    %v501 = vunpack.c.h.b16 %v401
    %v502 = vunpack.c.l.b16 %v402
    %v503 = vunpack.c.h.b16 %v402
    %v504 = vunpack.c.l.b16 %v403
    %v505 = vunpack.c.h.b16 %v403
    %v506 = vpack.c.b16 %v444, %v442
    %v507 = vpack.c.b16 %v445, %v443
    %v508 = vpack.c.b16 %v448, %v446
    %v509 = vpack.c.b16 %v449, %v447
    %v510 = vpack.c.b16 %v452, %v450
    %v511 = vpack.c.b16 %v453, %v451
    %v512 = vpack.c.b16 %v456, %v454
    %v513 = vpack.c.b16 %v457, %v455
    %v514 = vpack.c.b16 %v460, %v458
    %v515 = vpack.c.b16 %v461, %v459
    %v516 = vpack.c.b16 %v464, %v462
    %v517 = vpack.c.b16 %v465, %v463
    %v518 = vpack.c.b16 %v468, %v466
    %v519 = vpack.c.b16 %v469, %v467
    %v520 = vpack.c.b16 %v472, %v470
    %v521 = vpack.c.b16 %v473, %v471
    %v522 = vpack.c.b16 %v476, %v474
    %v523 = vpack.c.b16 %v477, %v475
    %v524 = vpack.c.b16 %v480, %v478
    %v525 = vpack.c.b16 %v481, %v479
    %v526 = vpack.c.b16 %v484, %v482
    %v527 = vpack.c.b16 %v485, %v483
    %v528 = vpack.c.b16 %v488, %v486
    %v529 = vpack.c.b16 %v489, %v487
    %v530 = vpack.c.b16 %v492, %v490
    %v531 = vpack.c.b16 %v493, %v491
    %v532 = vpack.c.b16 %v496, %v494
    %v533 = vpack.c.b16 %v497, %v495
    %v534 = vpack.c.b16 %v500, %v498
    %v535 = vpack.c.b16 %v501, %v499
    %v536 = vpack.c.b16 %v504, %v502
    %v537 = vpack.c.b16 %v505, %v503
    %570 = vmatpush.bf16.msra.mxu0 %v520
    %571 = vmatpush.bf16.msra.mxu0 %v518
    %572 = vmatpush.bf16.msra.mxu0 %v516
    %573 = vmatpush.bf16.msra.mxu0 %v514
    %574 = vmatpush.bf16.msra.mxu0 %v512
    %575 = vmatpush.bf16.msra.mxu0 %v510
    %576 = vmatpush.bf16.msra.mxu0 %v508
    %577 = vmatpush.bf16.msra.mxu0 %v506
    %578 = vmatmul.bf16.gmra.mxu0 %v370
    %v579 = vpop.f32.mrf.mxu0
    %v580 = vadd.f32 %v406, %v579
    %v581 = vpop.f32.mrf.mxu0
    %582 = vdwg.mxu0
    %583 = vmatpush.bf16.msra.mxu0 %v536
    %584 = vmatpush.bf16.msra.mxu0 %v534
    %585 = vmatpush.bf16.msra.mxu0 %v532
    %586 = vmatpush.bf16.msra.mxu0 %v530
    %587 = vmatpush.bf16.msra.mxu0 %v528
    %588 = vmatpush.bf16.msra.mxu0 %v526
    %589 = vmatpush.bf16.msra.mxu0 %v524
    %590 = vmatpush.bf16.msra.mxu0 %v522
    %591 = vmatmul.bf16.gmra.mxu0 %v371
    %v592 = vpop.f32.mrf.mxu0
    %v593 = vadd.f32 %v580, %v592
    %v594 = vpop.f32.mrf.mxu0
    %595 = vdwg.mxu0
    %596 = vmatpush.bf16.msra.mxu0 %v521
    %597 = vmatpush.bf16.msra.mxu0 %v519
    %598 = vmatpush.bf16.msra.mxu0 %v517
    %599 = vmatpush.bf16.msra.mxu0 %v515
    %600 = vmatpush.bf16.msra.mxu0 %v513
    %601 = vmatpush.bf16.msra.mxu0 %v511
    %602 = vmatpush.bf16.msra.mxu0 %v509
    %603 = vmatpush.bf16.msra.mxu0 %v507
    %604 = vmatmul.bf16.gmra.mxu0 %v370
    %v605 = vpop.f32.mrf.mxu0
    %v606 = vadd.f32 %v407, %v605
    %v607 = vpop.f32.mrf.mxu0
    %608 = vdwg.mxu0
    %609 = vmatpush.bf16.msra.mxu0 %v537
    %610 = vmatpush.bf16.msra.mxu0 %v535
    %611 = vmatpush.bf16.msra.mxu0 %v533
    %612 = vmatpush.bf16.msra.mxu0 %v531
    %613 = vmatpush.bf16.msra.mxu0 %v529
    %614 = vmatpush.bf16.msra.mxu0 %v527
    %615 = vmatpush.bf16.msra.mxu0 %v525
    %616 = vmatpush.bf16.msra.mxu0 %v523
    %617 = vmatmul.bf16.gmra.mxu0 %v371
    %v618 = vpop.f32.mrf.mxu0
    %v619 = vadd.f32 %v606, %v618
    %v620 = vpop.f32.mrf.mxu0
    %621 = vdwg.mxu0
    %v622 = vmax.f32 %v593, 0.0
    %v623 = vmax.f32 %v619, 0.0
    %v624 = vpack.c.bf16 %v622, %v622
    %v625 = vpack.c.bf16 %v623, %v623
    %v626 = vld [vmem:[%s7] sm:$0xf]
    %v627 = vld [vmem:[%s7 + $0x4] sm:$0xf]
    %v628 = vld [vmem:[%s7 + $0x8] sm:$0xf]
    %v629 = vld [vmem:[%s7 + $0xc] sm:$0xf]
    %v630 = vld [vmem:[%s7 + $0x10] sm:$0xf]
    %v631 = vld [vmem:[%s7 + $0x14] sm:$0xf]
    %v632 = vld [vmem:[%s7 + $0x18] sm:$0xf]
    %v633 = vld [vmem:[%s7 + $0x1c] sm:$0xf]
    %v634 = vld [vmem:[%s7 + $0x20] sm:$0xf]
    %v635 = vld [vmem:[%s7 + $0x24] sm:$0xf]
    %v636 = vld [vmem:[%s7 + $0x28] sm:$0xf]
    %v637 = vld [vmem:[%s7 + $0x2c] sm:$0xf]
    %v638 = vld [vmem:[%s7 + $0x30] sm:$0xf]
    %v639 = vld [vmem:[%s7 + $0x34] sm:$0xf]
    %v640 = vld [vmem:[%s7 + $0x38] sm:$0xf]
    %v641 = vld [vmem:[%s7 + $0x3c] sm:$0xf]
    %v642 = vld [vmem:[%s7 + $0x40] sm:$0xf]
    %v643 = vld [vmem:[%s7 + $0x44] sm:$0xf]
    %v644 = vld [vmem:[%s7 + $0x48] sm:$0xf]
    %v645 = vld [vmem:[%s7 + $0x4c] sm:$0xf]
    %v646 = vld [vmem:[%s7 + $0x50] sm:$0xf]
    %v647 = vld [vmem:[%s7 + $0x54] sm:$0xf]
    %v648 = vld [vmem:[%s7 + $0x58] sm:$0xf]
    %v649 = vld [vmem:[%s7 + $0x5c] sm:$0xf]
    %v650 = vld [vmem:[%s7 + $0x60] sm:$0xf]
    %v651 = vld [vmem:[%s7 + $0x64] sm:$0xf]
    %v652 = vld [vmem:[%s7 + $0x68] sm:$0xf]
    %v653 = vld [vmem:[%s7 + $0x6c] sm:$0xf]
    %v654 = vld [vmem:[%s7 + $0x70] sm:$0xf]
    %v655 = vld [vmem:[%s7 + $0x74] sm:$0xf]
    %v656 = vld [vmem:[%s7 + $0x78] sm:$0xf]
    %v657 = vld [vmem:[%s7 + $0x7c] sm:$0xf]
    %v658 = vld [vmem:[%s8] sm:$0x1]
    %v660 = vperm.slane %v658, 0
    %v694 = vunpack.c.l.b16 %v626
    %v695 = vunpack.c.l.b16 %v627
    %v696 = vunpack.c.l.b16 %v628
    %v697 = vunpack.c.l.b16 %v629
    %v698 = vunpack.c.l.b16 %v630
    %v699 = vunpack.c.l.b16 %v631
    %v700 = vunpack.c.l.b16 %v632
    %v701 = vunpack.c.l.b16 %v633
    %v702 = vunpack.c.l.b16 %v634
    %v703 = vunpack.c.l.b16 %v635
    %v704 = vunpack.c.l.b16 %v636
    %v705 = vunpack.c.l.b16 %v637
    %v706 = vunpack.c.l.b16 %v638
    %v707 = vunpack.c.l.b16 %v639
    %v708 = vunpack.c.l.b16 %v640
    %v709 = vunpack.c.l.b16 %v641
    %v710 = vunpack.c.l.b16 %v642
    %v711 = vunpack.c.l.b16 %v643
    %v712 = vunpack.c.l.b16 %v644
    %v713 = vunpack.c.l.b16 %v645
    %v714 = vunpack.c.l.b16 %v646
    %v715 = vunpack.c.l.b16 %v647
    %v716 = vunpack.c.l.b16 %v648
    %v717 = vunpack.c.l.b16 %v649
    %v718 = vunpack.c.l.b16 %v650
    %v719 = vunpack.c.l.b16 %v651
    %v720 = vunpack.c.l.b16 %v652
    %v721 = vunpack.c.l.b16 %v653
    %v722 = vunpack.c.l.b16 %v654
    %v723 = vunpack.c.l.b16 %v655
    %v724 = vunpack.c.l.b16 %v656
    %v725 = vunpack.c.l.b16 %v657
    %v726 = vpack.c.b16 %v695, %v694
    %v727 = vpack.c.b16 %v697, %v696
    %v728 = vpack.c.b16 %v699, %v698
    %v729 = vpack.c.b16 %v701, %v700
    %v730 = vpack.c.b16 %v703, %v702
    %v731 = vpack.c.b16 %v705, %v704
    %v732 = vpack.c.b16 %v707, %v706
    %v733 = vpack.c.b16 %v709, %v708
    %v734 = vpack.c.b16 %v711, %v710
    %v735 = vpack.c.b16 %v713, %v712
    %v736 = vpack.c.b16 %v715, %v714
    %v737 = vpack.c.b16 %v717, %v716
    %v738 = vpack.c.b16 %v719, %v718
    %v739 = vpack.c.b16 %v721, %v720
    %v740 = vpack.c.b16 %v723, %v722
    %v741 = vpack.c.b16 %v725, %v724
    %758 = vmatpush.bf16.msra.mxu0 %v733
    %759 = vmatpush.bf16.msra.mxu0 %v732
    %760 = vmatpush.bf16.msra.mxu0 %v731
    %761 = vmatpush.bf16.msra.mxu0 %v730
    %762 = vmatpush.bf16.msra.mxu0 %v729
    %763 = vmatpush.bf16.msra.mxu0 %v728
    %764 = vmatpush.bf16.msra.mxu0 %v727
    %765 = vmatpush.bf16.msra.mxu0 %v726
    %766 = vmatmul.bf16.gmra.mxu0 %v624
    %v767 = vpop.f32.mrf.mxu0
    %v768 = vadd.f32 %v660, %v767
    %v769 = vpop.f32.mrf.mxu0
    %770 = vdwg.mxu0
    %771 = vmatpush.bf16.msra.mxu0 %v741
    %772 = vmatpush.bf16.msra.mxu0 %v740
    %773 = vmatpush.bf16.msra.mxu0 %v739
    %774 = vmatpush.bf16.msra.mxu0 %v738
    %775 = vmatpush.bf16.msra.mxu0 %v737
    %776 = vmatpush.bf16.msra.mxu0 %v736
    %777 = vmatpush.bf16.msra.mxu0 %v735
    %778 = vmatpush.bf16.msra.mxu0 %v734
    %779 = vmatmul.bf16.gmra.mxu0 %v625
    %v780 = vpop.f32.mrf.mxu0
    %v781 = vadd.f32 %v768, %v780
    %v782 = vpop.f32.mrf.mxu0
    %783 = vdwg.mxu0
    %v784 = vlaneseq
    %v785 = vand.u32 %v784, 127
    %v786 = vmax.f32 %v781, -20.0
    %v787 = vmin.f32 %v786, 2.0
    %vm788 = vcmp.lt.s32.totalorder %v785, 2
    %v789 = vsel %vm788, %v781, %v787
    %vm790 = vcmask 31744
    %791 = vst.msk [vmem:[%s9] sm:$0xff] %vm790, %v789
    // Predicated region
    $region46: #{tpu_custom_call.1} parent=1 // pred_check
      _
    $region47: #{tpu_custom_call.1} parent=1 // pred_check_branch
      %793 = sbr.rel (0) target = $region49
    $region48: #{tpu_custom_call.1} parent=1 // pred_region
      _
    $region49: #{tpu_custom_call.1} parent=1 // pred_fallthru
      _
    // Predicated region
    $region50: #{tpu_custom_call.1} parent=1 // pred_check
      _
    $region51: #{tpu_custom_call.1} parent=1 // pred_check_branch
      %795 = sbr.rel (0) target = $region53
    $region52: #{tpu_custom_call.1} parent=1 // pred_region
      _
    $region53: #{tpu_custom_call.1} parent=1 // pred_fallthru
      _
    %796 = vsyncpa [#allocation3], 1
    %797 = vsyncpa [#allocation5], 1

</llo_original>
